<compile_context>
chip_gen: v7x
topology: tpu7x:2x2x1
jax: 0.10.0
libtpu: 0.0.40
codegen_flags: <defaults>
</compile_context>

<pallas_src>
import functools

import jax
import jax.numpy as jnp
import numpy as np
from jax.experimental import pallas as pl
from jax.experimental.pallas import tpu as pltpu


def _make_omega(embed_dim: int) -> np.ndarray:
    """omega table of _get_1d_sincos_embed_from_grid_torch: shape (1, embed_dim//2)."""
    assert embed_dim % 2 == 0, "sincos embed dim must be even"
    omega = np.arange(embed_dim // 2, dtype=np.float32)
    omega = omega / (embed_dim / 2.0)
    omega = 1.0 / (10000.0 ** omega)
    return omega.reshape(1, -1).astype(np.float32)


def _temporal_encoder_kernel(year_ref, day_ref, omega_y_ref, omega_d_ref,
                             scale_ref, out_ref, *, dy2, dd2):
    """year_ref/day_ref: (M,) f32 in SMEM.  omega_*: (1, D*/2) in VMEM.
    scale_ref: (1,) f32 in SMEM.  out_ref: (TP, embed_dim) block (frame dim squeezed)."""
    m = pl.program_id(0)              # frame index
    year = year_ref[m]                # scalar
    day = day_ref[m]                  # scalar
    scale = scale_ref[0]              # scalar
    tp = out_ref.shape[0]             # token rows in this block (static)

    # Scalar x vector outer products (VPU), then sin/cos on the EUP.
    ang_y = year * omega_y_ref[...]   # (1, dy2)
    ang_d = day * omega_d_ref[...]    # (1, dd2)

    # Fold the scale into the (1, seg) rows once, before the sublane broadcast.
    sin_y = (scale * jnp.sin(ang_y)).astype(out_ref.dtype)
    cos_y = (scale * jnp.cos(ang_y)).astype(out_ref.dtype)
    sin_d = (scale * jnp.sin(ang_d)).astype(out_ref.dtype)
    cos_d = (scale * jnp.cos(ang_d)).astype(out_ref.dtype)

    dy = 2 * dy2
    # Direct slice stores -- no concatenate, no relayout of a full temporary.
    out_ref[:, 0:dy2] = jnp.broadcast_to(sin_y, (tp, dy2))
    out_ref[:, dy2:dy] = jnp.broadcast_to(cos_y, (tp, dy2))
    out_ref[:, dy:dy + dd2] = jnp.broadcast_to(sin_d, (tp, dd2))
    out_ref[:, dy + dd2:dy + 2 * dd2] = jnp.broadcast_to(cos_d, (tp, dd2))


@functools.partial(jax.jit, static_argnames=("embed_dim", "tokens_per_frame"))
def temporal_encoder_forward(temporal_coords, scale, *, embed_dim,
                             tokens_per_frame=None):
    """temporal_coords: (B, T, 2) float32 [year, day-of-year]; scale: (1,) float32.

    Returns (B, T, embed_dim) if tokens_per_frame is None,
    else (B, T*tokens_per_frame, embed_dim) with the repeat fused in-kernel.
    """
    B, T, _ = temporal_coords.shape
    M = B * T
    P = 1 if tokens_per_frame is None else int(tokens_per_frame)

    year_dim = embed_dim // 2
    day_dim = embed_dim - year_dim
    dy2, dd2 = year_dim // 2, day_dim // 2

    omega_y = jnp.asarray(_make_omega(year_dim))   # (1, dy2)
    omega_d = jnp.asarray(_make_omega(day_dim))    # (1, dd2)

    coords = temporal_coords.astype(jnp.float32).reshape(M, 2)
    year = coords[:, 0]   # (M,) -> SMEM
    day = coords[:, 1]    # (M,) -> SMEM

    # Row tile over the tokens_per_frame axis: full extent if small, else a
    # 512-row tile (multiple of 8) -> <= ~2-4 MiB per output block, safe for
    # v7x's 64 MiB VMEM with double buffering.
    MAX_TP = 512
    tp = P if P <= MAX_TP else MAX_TP
    num_row_tiles = pl.cdiv(P, tp)

    kernel = functools.partial(_temporal_encoder_kernel, dy2=dy2, dd2=dd2)

    out = pl.pallas_call(
        kernel,
        out_shape=jax.ShapeDtypeStruct((M, P, embed_dim), jnp.float32),
        grid_spec=pl.GridSpec(
            grid=(M, num_row_tiles),
            in_specs=[
                pl.BlockSpec(memory_space=pltpu.SMEM),            # year (M,)
                pl.BlockSpec(memory_space=pltpu.SMEM),            # day  (M,)
                pl.BlockSpec((1, dy2), lambda m, r: (0, 0)),      # omega_y
                pl.BlockSpec((1, dd2), lambda m, r: (0, 0)),      # omega_d
                pl.BlockSpec(memory_space=pltpu.SMEM),            # scale (1,)
            ],
            out_specs=pl.BlockSpec((None, tp, embed_dim),
                                   lambda m, r: (m, r, 0)),
        ),
        compiler_params=pltpu.CompilerParams(
            dimension_semantics=("parallel", "parallel")),
    )(year, day, omega_y, omega_d, scale.astype(jnp.float32))

    if tokens_per_frame is None:
        return out.reshape(B, T, embed_dim)
    # (M, P, E) is already laid out as the repeat_interleave result; this
    # reshape is a pure metadata change (contiguous), not a copy of note.
    return out.reshape(B, T * tokens_per_frame, embed_dim)


def _reference_forward(temporal_coords, scale, embed_dim, tokens_per_frame=None):
    """Pure-JAX reference mirroring the PyTorch module exactly."""
    B, T, _ = temporal_coords.shape
    year_dim = embed_dim // 2
    day_dim = embed_dim - year_dim

    def sincos(d, pos):
        omega = np.arange(d // 2, dtype=np.float32) / (d / 2.0)
        omega = 1.0 / (10000.0 ** omega)
        out = pos.reshape(-1, 1) * omega.reshape(1, -1)
        return jnp.concatenate([jnp.sin(out), jnp.cos(out)], axis=1)

    coords = temporal_coords.astype(jnp.float32)
    year = sincos(year_dim, coords[:, :, 0].reshape(-1)).reshape(B, T, -1)
    day = sincos(day_dim, coords[:, :, 1].reshape(-1)).reshape(B, T, -1)
    emb = scale * jnp.concatenate([year, day], axis=-1)
    if tokens_per_frame is not None:
        emb = jnp.repeat(emb, tokens_per_frame, axis=1)
    return emb


if __name__ == "__main__":
    key = jax.random.PRNGKey(0)
    k_year, k_day = jax.random.split(key)

    # --- Case 1: small shapes matching the module defaults in the test -----
    B, T, embed_dim, tokens_per_frame = 2, 8, 32, 4
    years = jax.random.randint(k_year, (B, T), 2015, 2024).astype(jnp.float32)
    days = jax.random.randint(k_day, (B, T), 1, 366).astype(jnp.float32)
    temporal_coords = jnp.stack([years, days], axis=-1)   # (B, T, 2)
    scale = jnp.ones((1,), jnp.float32)                   # trainable_scale=False

    out = jax.block_until_ready(
        temporal_encoder_forward(temporal_coords, scale, embed_dim=embed_dim,
                                 tokens_per_frame=tokens_per_frame))
    ref = _reference_forward(temporal_coords, scale, embed_dim,
                             tokens_per_frame=tokens_per_frame)
    assert out.shape == (B, T * tokens_per_frame, embed_dim), out.shape
    np.testing.assert_allclose(np.asarray(out), np.asarray(ref),
                               rtol=1e-5, atol=1e-5)

    # --- Case 2: tokens_per_frame=None path -> (B, T, embed_dim) -----------
    out_none = jax.block_until_ready(
        temporal_encoder_forward(temporal_coords, scale, embed_dim=embed_dim))
    ref_none = _reference_forward(temporal_coords, scale, embed_dim)
    assert out_none.shape == (B, T, embed_dim)
    np.testing.assert_allclose(np.asarray(out_none), np.asarray(ref_none),
                               rtol=1e-5, atol=1e-5)

    # --- Case 3: larger tokens_per_frame exercising the 512-row tiling -----
    B2, T2, embed_dim2, tokens2 = 2, 4, 256, 600   # 600 > 512 -> 2 row tiles
    y2 = jax.random.randint(k_year, (B2, T2), 2000, 2024).astype(jnp.float32)
    d2 = jax.random.randint(k_day, (B2, T2), 1, 366).astype(jnp.float32)
    coords2 = jnp.stack([y2, d2], axis=-1)
    scale2 = jnp.full((1,), 0.1, jnp.float32)            # trainable_scale=True init
    out2 = jax.block_until_ready(
        temporal_encoder_forward(coords2, scale2, embed_dim=embed_dim2,
                                 tokens_per_frame=tokens2))
    ref2 = _reference_forward(coords2, scale2, embed_dim2,
                              tokens_per_frame=tokens2)
    assert out2.shape == (B2, T2 * tokens2, embed_dim2)
    np.testing.assert_allclose(np.asarray(out2), np.asarray(ref2),
                               rtol=1e-5, atol=1e-5)

    print("KERNEL_OK")
</pallas_src>

<mosaic_0001>
module attributes {stable_mosaic.version = 11 : i64} {
  func.func @_temporal_encoder_kernel(%arg0: i32, %arg1: i32, %arg2: memref<16xf32, #tpu.memory_space<smem>>, %arg3: memref<16xf32, #tpu.memory_space<smem>>, %arg4: memref<1x8xf32, #tpu.memory_space<vmem>>, %arg5: memref<1x8xf32, #tpu.memory_space<vmem>>, %arg6: memref<1xf32, #tpu.memory_space<smem>>, %arg7: memref<1x4x32xf32, #tpu.memory_space<vmem>>) attributes {dimension_semantics = [#tpu.dimension_semantics<parallel>, #tpu.dimension_semantics<parallel>], iteration_bounds = array<i64: 16, 1>, scalar_prefetch = 0 : i64, scratch_operands = 0 : i64, tpu.core_type = #tpu.core_type<tc>, window_params = [{transform_indices = @transform_0, window_bounds = array<i64: 16>}, {transform_indices = @transform_1, window_bounds = array<i64: 16>}, {pipeline_mode = #tpu.pipeline_mode<synchronous>, transform_indices = @transform_2, window_bounds = array<i64: 1, 8>}, {pipeline_mode = #tpu.pipeline_mode<synchronous>, transform_indices = @transform_3, window_bounds = array<i64: 1, 8>}, {transform_indices = @transform_4, window_bounds = array<i64: 1>}, {transform_indices = @transform_5, window_bounds = array<i64: 1, 4, 32>}]} {
    %0 = arith.index_cast %arg0 : i32 to index
    %1 = memref.load %arg2[%0] : memref<16xf32, #tpu.memory_space<smem>>
    %2 = arith.index_cast %arg0 : i32 to index
    %3 = memref.load %arg3[%2] : memref<16xf32, #tpu.memory_space<smem>>
    %c0 = arith.constant 0 : index
    %4 = memref.load %arg6[%c0] : memref<1xf32, #tpu.memory_space<smem>>
    %c0_0 = arith.constant 0 : index
    %c0_1 = arith.constant 0 : index
    %5 = vector.load %arg4[%c0_0, %c0_1] : memref<1x8xf32, #tpu.memory_space<vmem>>, vector<1x8xf32>
    %6 = vector.broadcast %1 : f32 to vector<1x8xf32>
    %7 = arith.mulf %6, %5 : vector<1x8xf32>
    %c0_2 = arith.constant 0 : index
    %c0_3 = arith.constant 0 : index
    %8 = vector.load %arg5[%c0_2, %c0_3] : memref<1x8xf32, #tpu.memory_space<vmem>>, vector<1x8xf32>
    %9 = vector.broadcast %3 : f32 to vector<1x8xf32>
    %10 = arith.mulf %9, %8 : vector<1x8xf32>
    %11 = math.sin %7 : vector<1x8xf32>
    %12 = vector.broadcast %4 : f32 to vector<1x8xf32>
    %13 = arith.mulf %12, %11 : vector<1x8xf32>
    %14 = math.cos %7 : vector<1x8xf32>
    %15 = vector.broadcast %4 : f32 to vector<1x8xf32>
    %16 = arith.mulf %15, %14 : vector<1x8xf32>
    %17 = math.sin %10 : vector<1x8xf32>
    %18 = vector.broadcast %4 : f32 to vector<1x8xf32>
    %19 = arith.mulf %18, %17 : vector<1x8xf32>
    %20 = math.cos %10 : vector<1x8xf32>
    %21 = vector.broadcast %4 : f32 to vector<1x8xf32>
    %22 = arith.mulf %21, %20 : vector<1x8xf32>
    %23 = vector.shape_cast %13 : vector<1x8xf32> to vector<1x8xf32>
    %24 = vector.broadcast %23 : vector<1x8xf32> to vector<4x8xf32>
    %c0_4 = arith.constant 0 : index
    %c0_5 = arith.constant 0 : index
    %c0_6 = arith.constant 0 : index
    %25 = vector.load %arg7[%c0_4, %c0_5, %c0_6] : memref<1x4x32xf32, #tpu.memory_space<vmem>>, vector<1x4x8xf32>
    %26 = vector.shape_cast %25 : vector<1x4x8xf32> to vector<4x8xf32>
    %27 = vector.shape_cast %24 : vector<4x8xf32> to vector<1x4x8xf32>
    tpu.vector_store %arg7[%c0_4, %c0_5, %c0_6], %27 {strides = array<i32>} : memref<1x4x32xf32, #tpu.memory_space<vmem>>, vector<1x4x8xf32>,
    %28 = vector.shape_cast %16 : vector<1x8xf32> to vector<1x8xf32>
    %29 = vector.broadcast %28 : vector<1x8xf32> to vector<4x8xf32>
    %c0_7 = arith.constant 0 : index
    %c0_8 = arith.constant 0 : index
    %c8 = arith.constant 8 : index
    %30 = vector.load %arg7[%c0_7, %c0_8, %c8] : memref<1x4x32xf32, #tpu.memory_space<vmem>>, vector<1x4x8xf32>
    %31 = vector.shape_cast %30 : vector<1x4x8xf32> to vector<4x8xf32>
    %32 = vector.shape_cast %29 : vector<4x8xf32> to vector<1x4x8xf32>
    tpu.vector_store %arg7[%c0_7, %c0_8, %c8], %32 {strides = array<i32>} : memref<1x4x32xf32, #tpu.memory_space<vmem>>, vector<1x4x8xf32>,
    %33 = vector.shape_cast %19 : vector<1x8xf32> to vector<1x8xf32>
    %34 = vector.broadcast %33 : vector<1x8xf32> to vector<4x8xf32>
    %c0_9 = arith.constant 0 : index
    %c0_10 = arith.constant 0 : index
    %c16 = arith.constant 16 : index
    %35 = vector.load %arg7[%c0_9, %c0_10, %c16] : memref<1x4x32xf32, #tpu.memory_space<vmem>>, vector<1x4x8xf32>
    %36 = vector.shape_cast %35 : vector<1x4x8xf32> to vector<4x8xf32>
    %37 = vector.shape_cast %34 : vector<4x8xf32> to vector<1x4x8xf32>
    tpu.vector_store %arg7[%c0_9, %c0_10, %c16], %37 {strides = array<i32>} : memref<1x4x32xf32, #tpu.memory_space<vmem>>, vector<1x4x8xf32>,
    %38 = vector.shape_cast %22 : vector<1x8xf32> to vector<1x8xf32>
    %39 = vector.broadcast %38 : vector<1x8xf32> to vector<4x8xf32>
    %c0_11 = arith.constant 0 : index
    %c0_12 = arith.constant 0 : index
    %c24 = arith.constant 24 : index
    %40 = vector.load %arg7[%c0_11, %c0_12, %c24] : memref<1x4x32xf32, #tpu.memory_space<vmem>>, vector<1x4x8xf32>
    %41 = vector.shape_cast %40 : vector<1x4x8xf32> to vector<4x8xf32>
    %42 = vector.shape_cast %39 : vector<4x8xf32> to vector<1x4x8xf32>
    tpu.vector_store %arg7[%c0_11, %c0_12, %c24], %42 {strides = array<i32>} : memref<1x4x32xf32, #tpu.memory_space<vmem>>, vector<1x4x8xf32>,
    return
  }
  func.func @transform_0(%arg0: i32, %arg1: i32) -> i32 {
    %c0_i32 = arith.constant 0 : i32
    %c0_i32_0 = arith.constant 0 : i32
    return %c0_i32 : i32
  }
  func.func @transform_1(%arg0: i32, %arg1: i32) -> i32 {
    %c0_i32 = arith.constant 0 : i32
    %c0_i32_0 = arith.constant 0 : i32
    return %c0_i32 : i32
  }
  func.func @transform_2(%arg0: i32, %arg1: i32) -> (i32, i32) {
    %c0_i32 = arith.constant 0 : i32
    %c0_i32_0 = arith.constant 0 : i32
    %c0_i32_1 = arith.constant 0 : i32
    return %c0_i32, %c0_i32_0 : i32, i32
  }
  func.func @transform_3(%arg0: i32, %arg1: i32) -> (i32, i32) {
    %c0_i32 = arith.constant 0 : i32
    %c0_i32_0 = arith.constant 0 : i32
    %c0_i32_1 = arith.constant 0 : i32
    return %c0_i32, %c0_i32_0 : i32, i32
  }
  func.func @transform_4(%arg0: i32, %arg1: i32) -> i32 {
    %c0_i32 = arith.constant 0 : i32
    %c0_i32_0 = arith.constant 0 : i32
    return %c0_i32 : i32
  }
  func.func @transform_5(%arg0: i32, %arg1: i32) -> (i32, i32, i32) {
    %c0_i32 = arith.constant 0 : i32
    %c0_i32_0 = arith.constant 0 : i32
    return %arg0, %arg1, %c0_i32 : i32, i32, i32
  }
}

</mosaic_0001>

<llo_original>
// kernel: temporal_encoder_forward.1
$region0: #{temporal_encoder_forward.1}
  #allocation0 [shape = 'u32[]', space=smem, size = 0x4, offset = 0x4, fixed_abs, tag = 'smem constant byte address 0x4 - core index']
  #allocation1 [shape = 'u32[144,128]{1,0:T(1,128)}', space=vmem, size = 0x12000, scoped, tag = 'internal scratch']
  #allocation2 [shape = 'f32[1]{0:T(128)S(6)}', space=smem, size = 0x200, scoped, tag = 'scoped memory for temporal_encoder_forward.1']
  %s0 = inlined_call_operand.vmem [shape: f32[16], index: 0, kind: input, shape index: {}]
  %s1 = inlined_call_operand.vmem [shape: f32[16], index: 1, kind: input, shape index: {}]
  %s2 = inlined_call_operand.vmem [shape: f32[1,8], index: 2, kind: input, shape index: {}, may-alias: {2,3}]
  %s3 = inlined_call_operand.vmem [shape: f32[1,8], index: 3, kind: input, shape index: {}, may-alias: {2,3}]
  %s4 = inlined_call_operand.<no memory space> [shape: f32[1], index: 4, kind: input, shape index: {}]
  %s5 = inlined_call_operand.hbm [shape: f32[16,4,32], index: 5, kind: output, shape index: {}]
  %s6 = sld [smem:[#allocation0]]
  $region61: #{temporal_encoder_forward.1} parent=0
    _
  %s8 = ssub.s32 1, %s6
  %s9 = scalar_select 0, %s8, %s6
  %10 = sst [smem:[#allocation2]] %s4
  $region1: #{temporal_encoder_forward.1} parent=0
    #allocation3 [shape = 'u8[512]{0}', space=smem, size = 0x200, scoped, tag = 'input window, operand 0, single buffered']
    #allocation4 [shape = 's32[2]{0}', space=sflag, size = 0x8, scoped, tag = 'scoped memory for temporal_encoder_forward.1']
    #allocation5 [shape = 's32[2]{0}', space=sflag, size = 0x8, scoped, tag = 'scoped memory for temporal_encoder_forward.1']
    #allocation6 [shape = 'u8[512]{0}', space=smem, size = 0x200, scoped, tag = 'input window, operand 1, single buffered']
    #allocation7 [shape = 's32[1]{0}', space=sflag, size = 0x4, scoped, tag = 'scoped memory for temporal_encoder_forward.1']
    #allocation8 [shape = 'u8[4096]{0}', space=vmem, size = 0x1000, scoped, tag = 'output window, operand 0']
    %11 = vsyncpa [#allocation5], 0
    %12 = vsyncpa [#allocation7], 0
    %13 = vsyncpa [#allocation4], 0
    %s14 = scalar_lea.sflag [#allocation4], 1
    %15 = vsyncpa %s14, 0
    loop: start=0, step=1, limit=18
    $region2: #{temporal_encoder_forward.1} parent=1 // loop_pre_header
      _
    $region3: #{temporal_encoder_forward.1} parent=1 // loop_header
      %s17 = sphi 0, %s21
      %p18 = scmp.ge.s32.totalorder %s17, 18
      %s24 = sphi 0, %s36
      %s25 = sphi 0, %s32
      %s26 = sphi 0, %s24
      %s27 = sphi 0, %s25
      %s28 = sphi 0, %s26
      %s29 = sphi 0, %s27
      %s37 = sphi 0, %s37
      %s39 = sphi 0, %s37
      %s40 = sphi 0, %s39
      %s54 = sphi 0, %s40
      %s58 = sphi 0, %s58
      %s60 = sphi 0, %s58
      %s61 = sphi 0, %s60
      %s75 = sphi 0, %s61
      %s79 = sphi 0, %s79
      %s81 = sphi 0, %s79
      %s82 = sphi 0, %s81
      %s96 = sphi 0, %s82
      %s100 = sphi 0, %s100
      %s102 = sphi 0, %s100
      %s103 = sphi 0, %s102
      %s117 = sphi 0, %s103
      %s121 = sphi 0, %s121
      %s123 = sphi 0, %s121
      %s124 = sphi 0, %s123
      %s138 = sphi 0, %s124
      %s146 = sphi 0, %s148
      %s149 = sphi 0, %s146
      %s150 = sphi 0, %s149
      %s166 = sphi 0, %s150
    $region4: #{temporal_encoder_forward.1} parent=1 // loop_header_branch
      %20 = sbr.rel (%p18) target = $region8
    $region5: #{temporal_encoder_forward.1} parent=1 // loop_body
      %s22 = ssub.s32 %s17, 1
      %s23 = ssub.s32 %s17, 2
      %s30 = sadd.s32 1, %s25
      %p31 = scmp.ge.s32.totalorder %s30, 1
      %s32 = scalar_select %p31, 0, %s30
      %s33 = sadd.s32 1, %s24
      %s34 = scalar_select %p31, %s33, %s24
      %p35 = scmp.ge.s32.totalorder %s34, 16
      %s36 = scalar_select %p35, 0, %s34
      %s38 = sadd.s32 %s37, 1
      %p41 = scmp.eq.s32.totalorder %s17, 15
      %p42 = scmp.ne.s32.totalorder %s37, %s39
      %p43 = scmp.eq.s32.totalorder %s17, 0
      %p44 = por %p42, %p43
      %p45 = scmp.ne.s32.totalorder %s37, %s39
      %p46 = scmp.eq.s32.totalorder %s22, 15
      %p47 = por %p45, %p46
      %p48 = scmp.ne.s32.totalorder %s39, %s40
      %p49 = scmp.eq.s32.totalorder %s22, 0
      %p50 = por %p48, %p49
      %p51 = scmp.ne.s32.totalorder %s39, %s40
      %p52 = scmp.eq.s32.totalorder %s23, 15
      %p53 = por %p51, %p52
      %p55 = scmp.ne.s32.totalorder %s40, %s54
      %p56 = scmp.eq.s32.totalorder %s23, 0
      %p57 = por %p55, %p56
      %s59 = sadd.s32 %s58, 1
      %p62 = scmp.eq.s32.totalorder %s17, 15
      %p63 = scmp.ne.s32.totalorder %s58, %s60
      %p64 = scmp.eq.s32.totalorder %s17, 0
      %p65 = por %p63, %p64
      %p66 = scmp.ne.s32.totalorder %s58, %s60
      %p67 = scmp.eq.s32.totalorder %s22, 15
      %p68 = por %p66, %p67
      %p69 = scmp.ne.s32.totalorder %s60, %s61
      %p70 = scmp.eq.s32.totalorder %s22, 0
      %p71 = por %p69, %p70
      %p72 = scmp.ne.s32.totalorder %s60, %s61
      %p73 = scmp.eq.s32.totalorder %s23, 15
      %p74 = por %p72, %p73
      %p76 = scmp.ne.s32.totalorder %s61, %s75
      %p77 = scmp.eq.s32.totalorder %s23, 0
      %p78 = por %p76, %p77
      %s80 = sadd.s32 %s79, 1
      %p83 = scmp.eq.s32.totalorder %s17, 15
      %p84 = scmp.ne.s32.totalorder %s79, %s81
      %p85 = scmp.eq.s32.totalorder %s17, 0
      %p86 = por %p84, %p85
      %p87 = scmp.ne.s32.totalorder %s79, %s81
      %p88 = scmp.eq.s32.totalorder %s22, 15
      %p89 = por %p87, %p88
      %p90 = scmp.ne.s32.totalorder %s81, %s82
      %p91 = scmp.eq.s32.totalorder %s22, 0
      %p92 = por %p90, %p91
      %p93 = scmp.ne.s32.totalorder %s81, %s82
      %p94 = scmp.eq.s32.totalorder %s23, 15
      %p95 = por %p93, %p94
      %p97 = scmp.ne.s32.totalorder %s82, %s96
      %p98 = scmp.eq.s32.totalorder %s23, 0
      %p99 = por %p97, %p98
      %s101 = sadd.s32 %s100, 1
      %p104 = scmp.eq.s32.totalorder %s17, 15
      %p105 = scmp.ne.s32.totalorder %s100, %s102
      %p106 = scmp.eq.s32.totalorder %s17, 0
      %p107 = por %p105, %p106
      %p108 = scmp.ne.s32.totalorder %s100, %s102
      %p109 = scmp.eq.s32.totalorder %s22, 15
      %p110 = por %p108, %p109
      %p111 = scmp.ne.s32.totalorder %s102, %s103
      %p112 = scmp.eq.s32.totalorder %s22, 0
      %p113 = por %p111, %p112
      %p114 = scmp.ne.s32.totalorder %s102, %s103
      %p115 = scmp.eq.s32.totalorder %s23, 15
      %p116 = por %p114, %p115
      %p118 = scmp.ne.s32.totalorder %s103, %s117
      %p119 = scmp.eq.s32.totalorder %s23, 0
      %p120 = por %p118, %p119
      %s122 = sadd.s32 %s121, 1
      %p125 = scmp.eq.s32.totalorder %s17, 15
      %p126 = scmp.ne.s32.totalorder %s121, %s123
      %p127 = scmp.eq.s32.totalorder %s17, 0
      %p128 = por %p126, %p127
      %p129 = scmp.ne.s32.totalorder %s121, %s123
      %p130 = scmp.eq.s32.totalorder %s22, 15
      %p131 = por %p129, %p130
      %p132 = scmp.ne.s32.totalorder %s123, %s124
      %p133 = scmp.eq.s32.totalorder %s22, 0
      %p134 = por %p132, %p133
      %p135 = scmp.ne.s32.totalorder %s123, %s124
      %p136 = scmp.eq.s32.totalorder %s23, 15
      %p137 = por %p135, %p136
      %p139 = scmp.ne.s32.totalorder %s124, %s138
      %p140 = scmp.eq.s32.totalorder %s23, 0
      %p141 = por %p139, %p140
      %s142 = ssub.s32 %s24, %s36
      %s143 = ssub.s32 %s25, %s32
      %s144 = sor.u32 %s142, %s143
      %p145 = scmp.eq.s32.totalorder %s144, 0
      %s147 = sadd.s32 %s146, 1
      %s148 = scalar_select %p145, %s146, %s147
      %p151 = pneg %p145
      %p152 = scmp.eq.s32.totalorder %s17, 15
      %p153 = por %p151, %p152
      %p154 = scmp.ne.s32.totalorder %s146, %s149
      %p155 = scmp.eq.s32.totalorder %s17, 0
      %p156 = por %p154, %p155
      %p157 = scmp.ne.s32.totalorder %s146, %s149
      %p158 = scmp.eq.s32.totalorder %s22, 15
      %p159 = por %p157, %p158
      %p160 = scmp.ne.s32.totalorder %s149, %s150
      %p161 = scmp.eq.s32.totalorder %s22, 0
      %p162 = por %p160, %p161
      %p163 = scmp.ne.s32.totalorder %s149, %s150
      %p164 = scmp.eq.s32.totalorder %s23, 15
      %p165 = por %p163, %p164
      %p167 = scmp.ne.s32.totalorder %s150, %s166
      %p168 = scmp.eq.s32.totalorder %s23, 0
      %p169 = por %p167, %p168
      %p170 = scmp.le.s32.totalorder 1, %s17
      %p171 = scmp.lt.s32.totalorder %s17, 17
      %p172 = pnand %p170, %p171
      %p173 = pneg %p172
      // Predicated region
      $region9: #{temporal_encoder_forward.1} parent=5 // pred_check
        _
      $region10: #{temporal_encoder_forward.1} parent=5 // pred_check_branch
        %175 = sbr.rel (%p172) target = $region12
      $region11: #{temporal_encoder_forward.1} parent=5 // pred_region
        %s176 = ssub.s32 %s17, 1
        // Predicated region
        $region13: #{temporal_encoder_forward.1} parent=11 // pred_check
          %p177 = pneg %p50
        $region14: #{temporal_encoder_forward.1} parent=11 // pred_check_branch
          %179 = sbr.rel (%p177) target = $region16
        $region15: #{temporal_encoder_forward.1} parent=11 // pred_region
          %s181 = ssub.s32 16, 16
          %182 = vsyncadd [#allocation5], %s181
          %s184 = sshll.u32 %s0, 4
          %s185 = int_to_ptr.vmem [resolvable:$true] %s184
          %187 = dma.vmem_to_smem %s185, 16, [#allocation3], [#allocation5]
        $region16: #{temporal_encoder_forward.1} parent=11 // pred_fallthru
          _
        // Predicated region
        $region17: #{temporal_encoder_forward.1} parent=11 // pred_check
          %p188 = pneg %p71
        $region18: #{temporal_encoder_forward.1} parent=11 // pred_check_branch
          %190 = sbr.rel (%p188) target = $region20
        $region19: #{temporal_encoder_forward.1} parent=11 // pred_region
          %s192 = ssub.s32 16, 16
          %193 = vsyncadd [#allocation7], %s192
          %s195 = sshll.u32 %s1, 4
          %s196 = int_to_ptr.vmem [resolvable:$true] %s195
          %198 = dma.vmem_to_smem %s196, 16, [#allocation6], [#allocation7]
        $region20: #{temporal_encoder_forward.1} parent=11 // pred_fallthru
          _
        // Predicated region
        $region21: #{temporal_encoder_forward.1} parent=11 // pred_check
          %p199 = pneg %p92
        $region22: #{temporal_encoder_forward.1} parent=11 // pred_check_branch
          %201 = sbr.rel (%p199) target = $region24
        $region23: #{temporal_encoder_forward.1} parent=11 // pred_region
          _
        $region24: #{temporal_encoder_forward.1} parent=11 // pred_fallthru
          _
        // Predicated region
        $region25: #{temporal_encoder_forward.1} parent=11 // pred_check
          %p202 = pneg %p113
        $region26: #{temporal_encoder_forward.1} parent=11 // pred_check_branch
          %204 = sbr.rel (%p202) target = $region28
        $region27: #{temporal_encoder_forward.1} parent=11 // pred_region
          _
        $region28: #{temporal_encoder_forward.1} parent=11 // pred_fallthru
          _
        // Predicated region
        $region29: #{temporal_encoder_forward.1} parent=11 // pred_check
          %p205 = pneg %p134
        $region30: #{temporal_encoder_forward.1} parent=11 // pred_check_branch
          %207 = sbr.rel (%p205) target = $region32
        $region31: #{temporal_encoder_forward.1} parent=11 // pred_region
          _
        $region32: #{temporal_encoder_forward.1} parent=11 // pred_fallthru
          _
      $region12: #{temporal_encoder_forward.1} parent=5 // pred_fallthru
        _
      %p208 = scmp.lt.s32.totalorder %s17, 16
      // Predicated region
      $region33: #{temporal_encoder_forward.1} parent=5 // pred_check
        %p209 = pneg %p208
      $region34: #{temporal_encoder_forward.1} parent=5 // pred_check_branch
        %211 = sbr.rel (%p209) target = $region36
      $region35: #{temporal_encoder_forward.1} parent=5 // pred_region
        _
      $region36: #{temporal_encoder_forward.1} parent=5 // pred_fallthru
        _
      %p212 = scmp.le.s32.totalorder 1, %s17
      %p213 = scmp.lt.s32.totalorder %s17, 17
      %p214 = pnand %p212, %p213
      %p215 = pneg %p214
      // Predicated region
      $region37: #{temporal_encoder_forward.1} parent=5 // pred_check
        _
      $region38: #{temporal_encoder_forward.1} parent=5 // pred_check_branch
        %217 = sbr.rel (%p214) target = $region40
      $region39: #{temporal_encoder_forward.1} parent=5 // pred_region
        %s218 = ssub.s32 %s17, 1
        // Predicated region
        $region41: #{temporal_encoder_forward.1} parent=39 // pred_check
          %p219 = pneg %p50
        $region42: #{temporal_encoder_forward.1} parent=39 // pred_check_branch
          %221 = sbr.rel (%p219) target = $region44
        $region43: #{temporal_encoder_forward.1} parent=39 // pred_region
          %222 = dma.done [#allocation5], 16
        $region44: #{temporal_encoder_forward.1} parent=39 // pred_fallthru
          _
        // Predicated region
        $region45: #{temporal_encoder_forward.1} parent=39 // pred_check
          %p223 = pneg %p71
        $region46: #{temporal_encoder_forward.1} parent=39 // pred_check_branch
          %225 = sbr.rel (%p223) target = $region48
        $region47: #{temporal_encoder_forward.1} parent=39 // pred_region
          %226 = dma.done [#allocation7], 16
        $region48: #{temporal_encoder_forward.1} parent=39 // pred_fallthru
          _
        %227 = sfence
        %p228 = pneg %p50
        %p229 = pneg %p47
        %p230 = pneg %p71
        %p231 = pneg %p68
        %p232 = pneg %p92
        %p233 = pneg %p89
        %p234 = pneg %p113
        %p235 = pneg %p110
        %p236 = pneg %p134
        %p237 = pneg %p131
        %p238 = pneg %p162
        %p239 = pneg %p159
        %s240 = sand.u32 %s149, 1
        %s241 = scalar_lea.sflag [#allocation4], %s240
        %s242 = sand.u32 %s149, 1
        %s243 = smul.addr %s242, 4
        %s244 = scalar_lea.vmem [#allocation8], %s243
        %s245 = sld [smem:[#allocation3 + %s26]]
        %s246 = sld [smem:[#allocation6 + %s26]]
        %s247 = sld [smem:[#allocation2]]
        %v248 = vld [vmem:[%s2] sm:$0x1]
        %v249 = vstv %s245
        %v250 = vmul.f32 %v249, %v248
        %v251 = vld [vmem:[%s3] sm:$0x1]
        %v252 = vstv %s246
        %v253 = vmul.f32 %v252, %v251
        %v254 = vand.u32 2147483647, %v250
        %vm255 = vcmp.le.f32.partialorder %v254, 0.7853982
        %vm256 = vcmp.lt.s32.totalorder %v250, 0
        %v257 = vand.u32 %v250, 2139095040
        %v258 = vshrl.u32 %v257, 23
        %v259 = vsub.s32 %v258, 127
        %v260 = vand.u32 2147483647, %v250
        %v261 = vand.u32 %v260, 8388607
        %v262 = vor.u32 %v261, 8388608
        %v263 = vsub.s32 0, %v262
        %v264 = vadd.s32 %v259, 1
        %vm265 = vcmp.gt.s32.totalorder %v264, 0
        %v266 = vsel %vm265, %v264, 0
        %v267 = vshrl.u32 %v266, 5
        %v268 = vand.u32 %v266, 31
        %v269 = vsub.s32 32, %v268
        %v270 = vshrl.u32 683565275, %v269
        %v271 = vshll.u32 683565275, %v268
        %v272 = vshrl.u32 2475754826, %v269
        %v273 = vor.u32 %v271, %v272
        %v274 = vshll.u32 2475754826, %v268
        %v275 = vshrl.u32 2131351028, %v269
        %v276 = vor.u32 %v274, %v275
        %v277 = vshll.u32 2131351028, %v268
        %v278 = vshrl.u32 2102212464, %v269
        %v279 = vor.u32 %v277, %v278
        %v280 = vshll.u32 2102212464, %v268
        %v281 = vshrl.u32 920167782, %v269
        %v282 = vor.u32 %v280, %v281
        %v283 = vshll.u32 920167782, %v268
        %v284 = vshrl.u32 1326507024, %v269
        %v285 = vor.u32 %v283, %v284
        %vm286 = vcmp.lt.s32.totalorder %v267, 1
        %vm287 = vcmp.lt.s32.totalorder %v267, 2
        %vm288 = vcmp.lt.s32.totalorder %v267, 3
        %vm289 = vcmp.lt.s32.totalorder %v267, 4
        %v290 = vsel %vm286, %v270, %v273
        %v291 = vsel %vm289, %v279, 2102212464
        %v292 = vsel %vm288, %v276, %v291
        %v293 = vsel %vm287, %v290, %v292
        %v294 = vsel %vm286, %v273, %v276
        %v295 = vsel %vm289, %v282, 920167782
        %v296 = vsel %vm288, %v279, %v295
        %v297 = vsel %vm287, %v294, %v296
        %v298 = vsel %vm286, %v276, %v279
        %v299 = vsel %vm289, %v285, 1326507024
        %v300 = vsel %vm288, %v282, %v299
        %v301 = vsel %vm287, %v298, %v300
        %v302 = vshll.u32 %v262, 8
        %v303 = vmul.u32.u64.compose %v302, %v301
        %v304 = vextract.low.u32 %v303
        %v305 = vextract.high.u32 %v303
        %v306 = vmul.u32.u64.compose %v302, %v297
        %v307 = vextract.low.u32 %v306
        %v308 = vextract.high.u32 %v306
        %v309 = vmul.u32 %v302, %v293
        %v310 = vadd.s32 %v305, %v307
        %vm311 = vc.u32 %v305, %v307
        %v312 = vadd.s32 %v308, 1
        %v313 = vsel %vm311, %v312, %v308
        %v314 = vadd.s32 %v309, %v313
        %v315 = vadd.s32 %v314, 536870912
        %v316 = vshrl.u32 %v315, 30
        %v317 = vshll.u32 %v316, 30
        %v318 = vsub.s32 %v314, %v317
        %vm319 = vcmp.lt.s32.totalorder %v318, 0
        %v320 = vsub.s32 0, %v318
        %v321 = vsel %vm319, %v320, %v318
        %v322 = vclz %v321
        %v323 = vsub.s32 %v322, 2
        %vm324 = vcmp.gt.s32.totalorder 0, %v323
        %v325 = vsel %vm324, 0, %v323
        %v326 = vsub.s32 32, %v325
        %v327 = vshll.u32 %v318, %v325
        %v328 = vshrl.u32 %v310, %v326
        %v329 = vor.u32 %v327, %v328
        %v330 = vsub.s32 4294967266, %v325
        %v331 = vadd.s32 %v330, 127
        %v332 = vshll.u32 %v331, 23
        %v333 = vor.u32 4788187, %v332
        %v334 = vand.u32 2147483647, %v333
        %v336 = vcvt.s32.f32 %v329
        %v337 = vmul.f32 %v336, %v334
        %v338 = vxor.u32 %v337, 2147483648
        %v339 = vsel %vm256, %v338, %v337
        %v340 = vsub.s32 4, %v316
        %v341 = vsel %vm256, %v340, %v316
        %v342 = vsel %vm255, %v250, %v339
        %v343 = vsel %vm255, 0, %v341
        %v344 = vcosq.f32.pop %v342
        %v345 = vsinq.f32.pop %v342
        %vm346 = vweird.f32 %v250
        %v347 = vadd.s32 %v343, 3
        %v348 = vand.u32 %v347, 3
        %vm349 = vcmp.lt.s32.totalorder %v348, 2
        %vm350 = vcmp.eq.s32.totalorder %v348, 0
        %v351 = vxor.u32 %v345, 2147483648
        %v352 = vsel %vm350, %v344, %v351
        %vm353 = vcmp.eq.s32.totalorder %v348, 2
        %v354 = vxor.u32 %v344, 2147483648
        %v355 = vsel %vm353, %v354, %v345
        %v356 = vsel %vm349, %v352, %v355
        %v357 = vsel %vm346, nan, %v356
        %v358 = vstv %s247
        %v359 = vmul.f32 %v358, %v357
        %v360 = vand.u32 2147483647, %v250
        %vm361 = vcmp.le.f32.partialorder %v360, 0.7853982
        %vm362 = vcmp.lt.s32.totalorder %v250, 0
        %v363 = vand.u32 %v250, 2139095040
        %v364 = vshrl.u32 %v363, 23
        %v365 = vsub.s32 %v364, 127
        %v366 = vand.u32 2147483647, %v250
        %v367 = vand.u32 %v366, 8388607
        %v368 = vor.u32 %v367, 8388608
        %v369 = vsub.s32 0, %v368
        %v370 = vadd.s32 %v365, 1
        %vm371 = vcmp.gt.s32.totalorder %v370, 0
        %v372 = vsel %vm371, %v370, 0
        %v373 = vshrl.u32 %v372, 5
        %v374 = vand.u32 %v372, 31
        %v375 = vsub.s32 32, %v374
        %v376 = vshrl.u32 683565275, %v375
        %v377 = vshll.u32 683565275, %v374
        %v378 = vshrl.u32 2475754826, %v375
        %v379 = vor.u32 %v377, %v378
        %v380 = vshll.u32 2475754826, %v374
        %v381 = vshrl.u32 2131351028, %v375
        %v382 = vor.u32 %v380, %v381
        %v383 = vshll.u32 2131351028, %v374
        %v384 = vshrl.u32 2102212464, %v375
        %v385 = vor.u32 %v383, %v384
        %v386 = vshll.u32 2102212464, %v374
        %v387 = vshrl.u32 920167782, %v375
        %v388 = vor.u32 %v386, %v387
        %v389 = vshll.u32 920167782, %v374
        %v390 = vshrl.u32 1326507024, %v375
        %v391 = vor.u32 %v389, %v390
        %vm392 = vcmp.lt.s32.totalorder %v373, 1
        %vm393 = vcmp.lt.s32.totalorder %v373, 2
        %vm394 = vcmp.lt.s32.totalorder %v373, 3
        %vm395 = vcmp.lt.s32.totalorder %v373, 4
        %v396 = vsel %vm392, %v376, %v379
        %v397 = vsel %vm395, %v385, 2102212464
        %v398 = vsel %vm394, %v382, %v397
        %v399 = vsel %vm393, %v396, %v398
        %v400 = vsel %vm392, %v379, %v382
        %v401 = vsel %vm395, %v388, 920167782
        %v402 = vsel %vm394, %v385, %v401
        %v403 = vsel %vm393, %v400, %v402
        %v404 = vsel %vm392, %v382, %v385
        %v405 = vsel %vm395, %v391, 1326507024
        %v406 = vsel %vm394, %v388, %v405
        %v407 = vsel %vm393, %v404, %v406
        %v408 = vshll.u32 %v368, 8
        %v409 = vmul.u32.u64.compose %v408, %v407
        %v410 = vextract.low.u32 %v409
        %v411 = vextract.high.u32 %v409
        %v412 = vmul.u32.u64.compose %v408, %v403
        %v413 = vextract.low.u32 %v412
        %v414 = vextract.high.u32 %v412
        %v415 = vmul.u32 %v408, %v399
        %v416 = vadd.s32 %v411, %v413
        %vm417 = vc.u32 %v411, %v413
        %v418 = vadd.s32 %v414, 1
        %v419 = vsel %vm417, %v418, %v414
        %v420 = vadd.s32 %v415, %v419
        %v421 = vadd.s32 %v420, 536870912
        %v422 = vshrl.u32 %v421, 30
        %v423 = vshll.u32 %v422, 30
        %v424 = vsub.s32 %v420, %v423
        %vm425 = vcmp.lt.s32.totalorder %v424, 0
        %v426 = vsub.s32 0, %v424
        %v427 = vsel %vm425, %v426, %v424
        %v428 = vclz %v427
        %v429 = vsub.s32 %v428, 2
        %vm430 = vcmp.gt.s32.totalorder 0, %v429
        %v431 = vsel %vm430, 0, %v429
        %v432 = vsub.s32 32, %v431
        %v433 = vshll.u32 %v424, %v431
        %v434 = vshrl.u32 %v416, %v432
        %v435 = vor.u32 %v433, %v434
        %v436 = vsub.s32 4294967266, %v431
        %v437 = vadd.s32 %v436, 127
        %v438 = vshll.u32 %v437, 23
        %v439 = vor.u32 4788187, %v438
        %v440 = vand.u32 2147483647, %v439
        %v442 = vcvt.s32.f32 %v435
        %v443 = vmul.f32 %v442, %v440
        %v444 = vxor.u32 %v443, 2147483648
        %v445 = vsel %vm362, %v444, %v443
        %v446 = vsub.s32 4, %v422
        %v447 = vsel %vm362, %v446, %v422
        %v448 = vsel %vm361, %v250, %v445
        %v449 = vsel %vm361, 0, %v447
        %v450 = vcosq.f32.pop %v448
        %v451 = vsinq.f32.pop %v448
        %vm452 = vweird.f32 %v250
        %v453 = vand.u32 %v449, 3
        %vm454 = vcmp.lt.s32.totalorder %v453, 2
        %vm455 = vcmp.eq.s32.totalorder %v453, 0
        %v456 = vxor.u32 %v451, 2147483648
        %v457 = vsel %vm455, %v450, %v456
        %vm458 = vcmp.eq.s32.totalorder %v453, 2
        %v459 = vxor.u32 %v450, 2147483648
        %v460 = vsel %vm458, %v459, %v451
        %v461 = vsel %vm454, %v457, %v460
        %v462 = vsel %vm452, nan, %v461
        %v463 = vmul.f32 %v358, %v462
        %v464 = vand.u32 2147483647, %v253
        %vm465 = vcmp.le.f32.partialorder %v464, 0.7853982
        %vm466 = vcmp.lt.s32.totalorder %v253, 0
        %v467 = vand.u32 %v253, 2139095040
        %v468 = vshrl.u32 %v467, 23
        %v469 = vsub.s32 %v468, 127
        %v470 = vand.u32 2147483647, %v253
        %v471 = vand.u32 %v470, 8388607
        %v472 = vor.u32 %v471, 8388608
        %v473 = vsub.s32 0, %v472
        %v474 = vadd.s32 %v469, 1
        %vm475 = vcmp.gt.s32.totalorder %v474, 0
        %v476 = vsel %vm475, %v474, 0
        %v477 = vshrl.u32 %v476, 5
        %v478 = vand.u32 %v476, 31
        %v479 = vsub.s32 32, %v478
        %v480 = vshrl.u32 683565275, %v479
        %v481 = vshll.u32 683565275, %v478
        %v482 = vshrl.u32 2475754826, %v479
        %v483 = vor.u32 %v481, %v482
        %v484 = vshll.u32 2475754826, %v478
        %v485 = vshrl.u32 2131351028, %v479
        %v486 = vor.u32 %v484, %v485
        %v487 = vshll.u32 2131351028, %v478
        %v488 = vshrl.u32 2102212464, %v479
        %v489 = vor.u32 %v487, %v488
        %v490 = vshll.u32 2102212464, %v478
        %v491 = vshrl.u32 920167782, %v479
        %v492 = vor.u32 %v490, %v491
        %v493 = vshll.u32 920167782, %v478
        %v494 = vshrl.u32 1326507024, %v479
        %v495 = vor.u32 %v493, %v494
        %vm496 = vcmp.lt.s32.totalorder %v477, 1
        %vm497 = vcmp.lt.s32.totalorder %v477, 2
        %vm498 = vcmp.lt.s32.totalorder %v477, 3
        %vm499 = vcmp.lt.s32.totalorder %v477, 4
        %v500 = vsel %vm496, %v480, %v483
        %v501 = vsel %vm499, %v489, 2102212464
        %v502 = vsel %vm498, %v486, %v501
        %v503 = vsel %vm497, %v500, %v502
        %v504 = vsel %vm496, %v483, %v486
        %v505 = vsel %vm499, %v492, 920167782
        %v506 = vsel %vm498, %v489, %v505
        %v507 = vsel %vm497, %v504, %v506
        %v508 = vsel %vm496, %v486, %v489
        %v509 = vsel %vm499, %v495, 1326507024
        %v510 = vsel %vm498, %v492, %v509
        %v511 = vsel %vm497, %v508, %v510
        %v512 = vshll.u32 %v472, 8
        %v513 = vmul.u32.u64.compose %v512, %v511
        %v514 = vextract.low.u32 %v513
        %v515 = vextract.high.u32 %v513
        %v516 = vmul.u32.u64.compose %v512, %v507
        %v517 = vextract.low.u32 %v516
        %v518 = vextract.high.u32 %v516
        %v519 = vmul.u32 %v512, %v503
        %v520 = vadd.s32 %v515, %v517
        %vm521 = vc.u32 %v515, %v517
        %v522 = vadd.s32 %v518, 1
        %v523 = vsel %vm521, %v522, %v518
        %v524 = vadd.s32 %v519, %v523
        %v525 = vadd.s32 %v524, 536870912
        %v526 = vshrl.u32 %v525, 30
        %v527 = vshll.u32 %v526, 30
        %v528 = vsub.s32 %v524, %v527
        %vm529 = vcmp.lt.s32.totalorder %v528, 0
        %v530 = vsub.s32 0, %v528
        %v531 = vsel %vm529, %v530, %v528
        %v532 = vclz %v531
        %v533 = vsub.s32 %v532, 2
        %vm534 = vcmp.gt.s32.totalorder 0, %v533
        %v535 = vsel %vm534, 0, %v533
        %v536 = vsub.s32 32, %v535
        %v537 = vshll.u32 %v528, %v535
        %v538 = vshrl.u32 %v520, %v536
        %v539 = vor.u32 %v537, %v538
        %v540 = vsub.s32 4294967266, %v535
        %v541 = vadd.s32 %v540, 127
        %v542 = vshll.u32 %v541, 23
        %v543 = vor.u32 4788187, %v542
        %v544 = vand.u32 2147483647, %v543
        %v546 = vcvt.s32.f32 %v539
        %v547 = vmul.f32 %v546, %v544
        %v548 = vxor.u32 %v547, 2147483648
        %v549 = vsel %vm466, %v548, %v547
        %v550 = vsub.s32 4, %v526
        %v551 = vsel %vm466, %v550, %v526
        %v552 = vsel %vm465, %v253, %v549
        %v553 = vsel %vm465, 0, %v551
        %v554 = vcosq.f32.pop %v552
        %v555 = vsinq.f32.pop %v552
        %vm556 = vweird.f32 %v253
        %v557 = vadd.s32 %v553, 3
        %v558 = vand.u32 %v557, 3
        %vm559 = vcmp.lt.s32.totalorder %v558, 2
        %vm560 = vcmp.eq.s32.totalorder %v558, 0
        %v561 = vxor.u32 %v555, 2147483648
        %v562 = vsel %vm560, %v554, %v561
        %vm563 = vcmp.eq.s32.totalorder %v558, 2
        %v564 = vxor.u32 %v554, 2147483648
        %v565 = vsel %vm563, %v564, %v555
        %v566 = vsel %vm559, %v562, %v565
        %v567 = vsel %vm556, nan, %v566
        %v568 = vmul.f32 %v358, %v567
        %v569 = vand.u32 2147483647, %v253
        %vm570 = vcmp.le.f32.partialorder %v569, 0.7853982
        %vm571 = vcmp.lt.s32.totalorder %v253, 0
        %v572 = vand.u32 %v253, 2139095040
        %v573 = vshrl.u32 %v572, 23
        %v574 = vsub.s32 %v573, 127
        %v575 = vand.u32 2147483647, %v253
        %v576 = vand.u32 %v575, 8388607
        %v577 = vor.u32 %v576, 8388608
        %v578 = vsub.s32 0, %v577
        %v579 = vadd.s32 %v574, 1
        %vm580 = vcmp.gt.s32.totalorder %v579, 0
        %v581 = vsel %vm580, %v579, 0
        %v582 = vshrl.u32 %v581, 5
        %v583 = vand.u32 %v581, 31
        %v584 = vsub.s32 32, %v583
        %v585 = vshrl.u32 683565275, %v584
        %v586 = vshll.u32 683565275, %v583
        %v587 = vshrl.u32 2475754826, %v584
        %v588 = vor.u32 %v586, %v587
        %v589 = vshll.u32 2475754826, %v583
        %v590 = vshrl.u32 2131351028, %v584
        %v591 = vor.u32 %v589, %v590
        %v592 = vshll.u32 2131351028, %v583
        %v593 = vshrl.u32 2102212464, %v584
        %v594 = vor.u32 %v592, %v593
        %v595 = vshll.u32 2102212464, %v583
        %v596 = vshrl.u32 920167782, %v584
        %v597 = vor.u32 %v595, %v596
        %v598 = vshll.u32 920167782, %v583
        %v599 = vshrl.u32 1326507024, %v584
        %v600 = vor.u32 %v598, %v599
        %vm601 = vcmp.lt.s32.totalorder %v582, 1
        %vm602 = vcmp.lt.s32.totalorder %v582, 2
        %vm603 = vcmp.lt.s32.totalorder %v582, 3
        %vm604 = vcmp.lt.s32.totalorder %v582, 4
        %v605 = vsel %vm601, %v585, %v588
        %v606 = vsel %vm604, %v594, 2102212464
        %v607 = vsel %vm603, %v591, %v606
        %v608 = vsel %vm602, %v605, %v607
        %v609 = vsel %vm601, %v588, %v591
        %v610 = vsel %vm604, %v597, 920167782
        %v611 = vsel %vm603, %v594, %v610
        %v612 = vsel %vm602, %v609, %v611
        %v613 = vsel %vm601, %v591, %v594
        %v614 = vsel %vm604, %v600, 1326507024
        %v615 = vsel %vm603, %v597, %v614
        %v616 = vsel %vm602, %v613, %v615
        %v617 = vshll.u32 %v577, 8
        %v618 = vmul.u32.u64.compose %v617, %v616
        %v619 = vextract.low.u32 %v618
        %v620 = vextract.high.u32 %v618
        %v621 = vmul.u32.u64.compose %v617, %v612
        %v622 = vextract.low.u32 %v621
        %v623 = vextract.high.u32 %v621
        %v624 = vmul.u32 %v617, %v608
        %v625 = vadd.s32 %v620, %v622
        %vm626 = vc.u32 %v620, %v622
        %v627 = vadd.s32 %v623, 1
        %v628 = vsel %vm626, %v627, %v623
        %v629 = vadd.s32 %v624, %v628
        %v630 = vadd.s32 %v629, 536870912
        %v631 = vshrl.u32 %v630, 30
        %v632 = vshll.u32 %v631, 30
        %v633 = vsub.s32 %v629, %v632
        %vm634 = vcmp.lt.s32.totalorder %v633, 0
        %v635 = vsub.s32 0, %v633
        %v636 = vsel %vm634, %v635, %v633
        %v637 = vclz %v636
        %v638 = vsub.s32 %v637, 2
        %vm639 = vcmp.gt.s32.totalorder 0, %v638
        %v640 = vsel %vm639, 0, %v638
        %v641 = vsub.s32 32, %v640
        %v642 = vshll.u32 %v633, %v640
        %v643 = vshrl.u32 %v625, %v641
        %v644 = vor.u32 %v642, %v643
        %v645 = vsub.s32 4294967266, %v640
        %v646 = vadd.s32 %v645, 127
        %v647 = vshll.u32 %v646, 23
        %v648 = vor.u32 4788187, %v647
        %v649 = vand.u32 2147483647, %v648
        %v651 = vcvt.s32.f32 %v644
        %v652 = vmul.f32 %v651, %v649
        %v653 = vxor.u32 %v652, 2147483648
        %v654 = vsel %vm571, %v653, %v652
        %v655 = vsub.s32 4, %v631
        %v656 = vsel %vm571, %v655, %v631
        %v657 = vsel %vm570, %v253, %v654
        %v658 = vsel %vm570, 0, %v656
        %v659 = vcosq.f32.pop %v657
        %v660 = vsinq.f32.pop %v657
        %vm661 = vweird.f32 %v253
        %v662 = vand.u32 %v658, 3
        %vm663 = vcmp.lt.s32.totalorder %v662, 2
        %vm664 = vcmp.eq.s32.totalorder %v662, 0
        %v665 = vxor.u32 %v660, 2147483648
        %v666 = vsel %vm664, %v659, %v665
        %vm667 = vcmp.eq.s32.totalorder %v662, 2
        %v668 = vxor.u32 %v659, 2147483648
        %v669 = vsel %vm667, %v668, %v660
        %v670 = vsel %vm663, %v666, %v669
        %v671 = vsel %vm661, nan, %v670
        %v672 = vmul.f32 %v358, %v671
        %v674 = vlaneseq
        %v675 = vshrl.u32 %v674, 7
        %v676 = vsub.s32 0, %v675
        %v677 = vrot.slane %v359, %v676
        %vm679 = vcmask 60416
        %680 = vst.msk [vmem:[%s244] sm:$0xf] %vm679, %v677
        %v682 = vlaneseq
        %v683 = vshrl.u32 %v682, 7
        %v684 = vsub.s32 0, %v683
        %v685 = vrot.slane %v463, %v684
        %686 = vrot.lane.b32.xlu0 %v685, 8
        %v687 = vpop.permute.xlu0 %686
        %vm689 = vcmask 126016
        %690 = vst.msk [vmem:[%s244] sm:$0xf] %vm689, %v687
        %v692 = vlaneseq
        %v693 = vshrl.u32 %v692, 7
        %v694 = vsub.s32 0, %v693
        %v695 = vrot.slane %v568, %v694
        %696 = vrot.lane.b32.xlu0 %v695, 16
        %v697 = vpop.permute.xlu0 %696
        %vm699 = vcmask 191616
        %700 = vst.msk [vmem:[%s244] sm:$0xf] %vm699, %v697
        %v702 = vlaneseq
        %v703 = vshrl.u32 %v702, 7
        %v704 = vsub.s32 0, %v703
        %v705 = vrot.slane %v672, %v704
        %706 = vrot.lane.b32.xlu0 %v705, 24
        %v707 = vpop.permute.xlu0 %706
        %vm709 = vcmask 257216
        %710 = vst.msk [vmem:[%s244] sm:$0xf] %vm709, %v707
        %s711 = sand.u32 %s149, 1
        %s712 = scalar_lea.sflag [#allocation4], %s711
        %s713 = sand.u32 %s149, 1
        %s714 = smul.addr %s713, 4
        %s715 = scalar_lea.vmem [#allocation8], %s714
        // Predicated region
        $region49: #{temporal_encoder_forward.1} parent=39 // pred_check
          %p716 = pneg %p159
        $region50: #{temporal_encoder_forward.1} parent=39 // pred_check_branch
          %718 = sbr.rel (%p716) target = $region52
        $region51: #{temporal_encoder_forward.1} parent=39 // pred_region
          %s720 = ssub.s32 64, 64
          %721 = vsyncadd %s712, %s720
          %s722 = sadd.s32 %s27, %s26
          %s723 = smul.addr %s722, 64
          %s724 = scalar_lea.hbm %s5, %s723
          %s726 = sshll.u32 %s715, 4
          %s727 = int_to_ptr.vmem [resolvable:$true] %s726
          %729 = dma.vmem_to_hbm [thread:$0]  %s727, 64, %s724, %s712
        $region52: #{temporal_encoder_forward.1} parent=39 // pred_fallthru
          _
      $region40: #{temporal_encoder_forward.1} parent=5 // pred_fallthru
        _
      %p730 = scmp.le.s32.totalorder 2, %s17
      // Predicated region
      $region53: #{temporal_encoder_forward.1} parent=5 // pred_check
        %p731 = pneg %p730
      $region54: #{temporal_encoder_forward.1} parent=5 // pred_check_branch
        %733 = sbr.rel (%p731) target = $region56
      $region55: #{temporal_encoder_forward.1} parent=5 // pred_region
        %s734 = ssub.s32 %s17, 2
        // Predicated region
        $region57: #{temporal_encoder_forward.1} parent=55 // pred_check
          %p735 = pneg %p165
        $region58: #{temporal_encoder_forward.1} parent=55 // pred_check_branch
          %737 = sbr.rel (%p735) target = $region60
        $region59: #{temporal_encoder_forward.1} parent=55 // pred_region
          %s738 = sand.u32 %s150, 1
          %s739 = scalar_lea.sflag [#allocation4], %s738
          %s740 = sand.u32 %s150, 1
          %s741 = smul.addr %s740, 4
          %s742 = scalar_lea.vmem [#allocation8], %s741
          %743 = dma.done %s739, 64
        $region60: #{temporal_encoder_forward.1} parent=55 // pred_fallthru
          _
      $region56: #{temporal_encoder_forward.1} parent=5 // pred_fallthru
        _
    $region6: #{temporal_encoder_forward.1} parent=1 // loop_footer
      %s21 = sadd.s32 1, %s17
    $region7: #{temporal_encoder_forward.1} parent=1 // loop_footer_branch
      %16 = sbr.rel target = $region3
    $region8: #{temporal_encoder_forward.1} parent=1 // loop_exit
      _
    %744 = vsyncpa [#allocation4], 1
    %s745 = scalar_lea.sflag [#allocation4], 1
    %746 = vsyncpa %s745, 1
    %747 = vsyncpa [#allocation5], 1
    %s748 = scalar_lea.sflag [#allocation5], 1
    %749 = vsyncpa %s748, 1
    %750 = vsyncpa [#allocation7], 1

</llo_original>
